<compile_context>
chip_gen: v7x
topology: tpu7x:2x2x1
jax: 0.10.0
libtpu: 0.0.40
codegen_flags: <defaults>
</compile_context>

<pallas_src>
import functools

import jax
import jax.numpy as jnp
from jax.experimental import pallas as pl
from jax.experimental.pallas import tpu as pltpu


def _accumulate(x_ref, sum_ref, max_ref, k, *, hw, tile, group, ngroups, masked):
    """VPU-only accumulation of one (1, C, T) tile into the lane-dense
    (C, group) partial-sum / partial-max scratch buffers."""

    def step(g, carry):
        s, m = carry
        off = g * group
        if not isinstance(off, int):
            off = pl.multiple_of(off, group)
        blk = x_ref[0, :, pl.ds(off, group)].astype(jnp.float32)
        if masked:
            col = k * tile + off + jax.lax.broadcasted_iota(jnp.int32, blk.shape, 1)
            valid = col < hw
            s = s + jnp.where(valid, blk, 0.0)
            m = jnp.maximum(m, jnp.where(valid, blk, -jnp.inf))
        else:
            s = s + blk
            m = jnp.maximum(m, blk)
        return s, m

    init = (sum_ref[...], max_ref[...])
    if ngroups == 1:
        s, m = step(0, init)
    else:
        s, m = jax.lax.fori_loop(0, ngroups, step, init,
                                 unroll=min(ngroups, 8))
    sum_ref[...] = s
    max_ref[...] = m


def channel_attention_kernel(x_ref, w1_ref, w2_ref, o_ref, sum_ref, max_ref,
                             *, hw, tile, group, ngroups):
    # x_ref:  (1, C, T)   spatial tile of one batch element
    # w1_ref: (Cr, C)     first 1x1-conv weight (grid-resident)
    # w2_ref: (C, Cr)     second 1x1-conv weight (grid-resident)
    # o_ref:  (1, 1, C)   lane-dense sigmoid(fc(avg) + fc(max)) output
    # sum_ref/max_ref: (C, group) f32 lane-dense partial accumulators
    k = pl.program_id(1)
    last = pl.num_programs(1) - 1

    @pl.when(k == 0)
    def _init():
        sum_ref[...] = jnp.zeros_like(sum_ref)
        max_ref[...] = jnp.full(max_ref.shape, -jnp.inf, max_ref.dtype)

    acc = functools.partial(_accumulate, x_ref, sum_ref, max_ref, k,
                            hw=hw, tile=tile, group=group, ngroups=ngroups)

    if hw % tile != 0:
        # Only the last tile is ragged: keep the mask off the hot path.
        @pl.when(k < last)
        def _full_tiles():
            acc(masked=False)

        @pl.when(k == last)
        def _tail_tile():
            acc(masked=True)
    else:
        acc(masked=False)

    @pl.when(k == last)
    def _finalize():
        # Single cross-lane reduce of the lane-dense partials.
        avg = jnp.sum(sum_ref[...], axis=-1, keepdims=True) * (1.0 / hw)   # (C, 1)
        mxv = jnp.max(max_ref[...], axis=-1, keepdims=True)                # (C, 1)
        pooled = jnp.concatenate([avg.T, mxv.T], axis=0)                   # (2, C)
        w1 = w1_ref[...].astype(jnp.float32)
        w2 = w2_ref[...].astype(jnp.float32)
        h = jax.lax.dot_general(pooled, w1, (((1,), (1,)), ((), ())),
                                preferred_element_type=jnp.float32)        # (2, Cr)
        h = jnp.maximum(h, 0.0)                                            # ReLU
        logits = jax.lax.dot_general(h, w2, (((1,), (1,)), ((), ())),
                                     preferred_element_type=jnp.float32)   # (2, C)
        out = jax.nn.sigmoid(logits[0:1, :] + logits[1:2, :])              # (1, C)
        o_ref[0] = out.astype(o_ref.dtype)


def _choose_tile(hw, c, n, itemsize, *, byte_budget, min_grid_steps):
    """Pick the spatial tile width T and the lane-group width G."""
    if hw < 128:
        return hw, hw
    # Byte-budgeted lane width, 128-aligned, floor 512 lanes.
    lanes = (byte_budget // (c * itemsize)) // 128 * 128
    lanes = max(512, lanes)
    hw_pad = pl.cdiv(hw, 128) * 128
    t = min(lanes, hw_pad)
    # Guarantee the software pipeline has enough grid steps to overlap DMA.
    while n * pl.cdiv(hw, t) < min_grid_steps and t > 128:
        t = max(128, ((t // 2) // 128) * 128)
    return t, 128


def channel_attention(x, w1, w2, *, byte_budget=4 << 20, min_grid_steps=4):
    """x: (N, C, H, W); w1: (C//r, C); w2: (C, C//r).  Returns (N, C, 1, 1)."""
    N, C, H, W = x.shape
    Cr = w1.shape[0]
    HW = H * W
    itemsize = x.dtype.itemsize
    x_flat = x.reshape(N, C, HW)

    T, G = _choose_tile(HW, C, N, itemsize,
                        byte_budget=byte_budget, min_grid_steps=min_grid_steps)
    KT = pl.cdiv(HW, T)
    ngroups = T // G

    # VMEM: double-buffered x blocks + resident weights + accumulators + out.
    x_block = C * T * itemsize
    w_bytes = w1.size * w1.dtype.itemsize + w2.size * w2.dtype.itemsize
    scratch_bytes = 2 * C * G * 4
    out_bytes = C * x.dtype.itemsize
    vmem_needed = 2 * x_block + 2 * w_bytes + scratch_bytes + 2 * out_bytes
    vmem_limit = int(min(max(int(vmem_needed * 1.5), 16 << 20), 48 << 20))

    kernel = functools.partial(channel_attention_kernel,
                               hw=HW, tile=T, group=G, ngroups=ngroups)

    cost = pl.CostEstimate(
        flops=int(2 * N * C * HW + N * 2 * 2 * 2 * C * Cr),
        transcendentals=int(N * C),
        bytes_accessed=int(N * C * HW * itemsize + 2 * w_bytes + N * C * itemsize),
    )

    out = pl.pallas_call(
        kernel,
        out_shape=jax.ShapeDtypeStruct((N, 1, C), x.dtype),
        grid=(N, KT),
        in_specs=[
            pl.BlockSpec((1, C, T), lambda n, k: (n, 0, k)),
            pl.BlockSpec((Cr, C), lambda n, k: (0, 0)),
            pl.BlockSpec((C, Cr), lambda n, k: (0, 0)),
        ],
        # Lane-dense output slab; same block across the reduction axis.
        out_specs=pl.BlockSpec((1, 1, C), lambda n, k: (n, 0, 0)),
        scratch_shapes=[
            pltpu.VMEM((C, G), jnp.float32),  # lane-dense partial sums
            pltpu.VMEM((C, G), jnp.float32),  # lane-dense partial maxes
        ],
        compiler_params=pltpu.CompilerParams(
            dimension_semantics=("parallel", "arbitrary"),
            vmem_limit_bytes=vmem_limit),
        cost_estimate=cost,
    )(x_flat, w1, w2)
    # Note: on v7x a 2-way split of the KT reduction (one half per TensorCore,
    # combined in a tiny epilogue) would use both cores at batch-1; omitted
    # here since it is a no-op on v5e/v6e.
    return out.reshape(N, C, 1, 1)


def channel_attention_ref(x, w1, w2):
    # Pure-JAX reference mirroring the PyTorch forward.
    avg = jnp.mean(x, axis=(2, 3))  # (N, C)
    mxp = jnp.max(x, axis=(2, 3))   # (N, C)

    def fc(v):  # v: (N, C)
        h = jnp.maximum(v @ w1.T, 0.0)  # (N, Cr)
        return h @ w2.T                 # (N, C)

    out = jax.nn.sigmoid(fc(avg) + fc(mxp))
    return out[:, :, None, None]


if __name__ == "__main__":
    reduction = 4
    key = jax.random.PRNGKey(0)
    N, C = 2, 16
    Cr = C // reduction
    kx1, kx2, kx3, k1, k2 = jax.random.split(key, 5)
    w1 = jax.random.normal(k1, (Cr, C), dtype=jnp.float32) * 0.2
    w2 = jax.random.normal(k2, (C, Cr), dtype=jnp.float32) * 0.2

    # Case 1: HW=256 -> T=128, KT=2 (accumulator across tiles, no masking).
    x1 = jax.random.normal(kx1, (N, C, 16, 16), dtype=jnp.float32)
    y1 = jax.block_until_ready(channel_attention(x1, w1, w2))
    assert y1.shape == (N, C, 1, 1)
    assert jnp.allclose(y1, channel_attention_ref(x1, w1, w2), atol=1e-5, rtol=1e-5)

    # Case 2: HW=324 (ragged) -> masked last-tile path.
    x2 = jax.random.normal(kx2, (N, C, 18, 18), dtype=jnp.float32)
    y2 = jax.block_until_ready(channel_attention(x2, w1, w2))
    assert y2.shape == (N, C, 1, 1)
    assert jnp.allclose(y2, channel_attention_ref(x2, w1, w2), atol=1e-5, rtol=1e-5)

    # Case 3: HW=4096 -> T=2048, 16 lane-groups (exercises the fori_loop path).
    x3 = jax.random.normal(kx3, (N, C, 64, 64), dtype=jnp.float32)
    y3 = jax.block_until_ready(channel_attention(x3, w1, w2))
    assert y3.shape == (N, C, 1, 1)
    assert jnp.allclose(y3, channel_attention_ref(x3, w1, w2), atol=1e-5, rtol=1e-5)

    print("KERNEL_OK")
</pallas_src>

<mosaic_0001>
module attributes {stable_mosaic.version = 11 : i64} {
  func.func @channel_attention_kernel(%arg0: i32, %arg1: i32, %arg2: memref<1x16x128xf32, #tpu.memory_space<vmem>>, %arg3: memref<4x16xf32, #tpu.memory_space<vmem>>, %arg4: memref<16x4xf32, #tpu.memory_space<vmem>>, %arg5: memref<1x1x16xf32, #tpu.memory_space<vmem>>, %arg6: memref<16x128xf32, #tpu.memory_space<vmem>>, %arg7: memref<16x128xf32, #tpu.memory_space<vmem>>) attributes {dimension_semantics = [#tpu.dimension_semantics<parallel>, #tpu.dimension_semantics<arbitrary>], iteration_bounds = array<i64: 2, 2>, scalar_prefetch = 0 : i64, scratch_operands = 2 : i64, tpu.core_type = #tpu.core_type<tc>, window_params = [{transform_indices = @transform_0, window_bounds = array<i64: 1, 16, 128>}, {pipeline_mode = #tpu.pipeline_mode<synchronous>, transform_indices = @transform_1, window_bounds = array<i64: 4, 16>}, {pipeline_mode = #tpu.pipeline_mode<synchronous>, transform_indices = @transform_2, window_bounds = array<i64: 16, 4>}, {transform_indices = @transform_3, window_bounds = array<i64: 1, 1, 16>}]} {
    %c0_i32 = arith.constant 0 : i32
    %0 = arith.cmpi eq, %arg1, %c0_i32 : i32
    %1 = arith.extui %0 : i1 to i32
    %c0_i32_0 = arith.constant 0 : i32
    %2 = arith.cmpi ne, %1, %c0_i32_0 : i32
    scf.if %2 {
      %cst = arith.constant 0.000000e+00 : f32
      %14 = vector.broadcast %cst : f32 to vector<16x128xf32>
      %c0_12 = arith.constant 0 : index
      %c0_13 = arith.constant 0 : index
      %15 = vector.load %arg6[%c0_12, %c0_13] : memref<16x128xf32, #tpu.memory_space<vmem>>, vector<16x128xf32>
      tpu.vector_store %arg6[%c0_12, %c0_13], %14 {strides = array<i32>} : memref<16x128xf32, #tpu.memory_space<vmem>>, vector<16x128xf32>,
      %cst_14 = arith.constant 0xFF800000 : f32
      %16 = vector.broadcast %cst_14 : f32 to vector<16x128xf32>
      %c0_15 = arith.constant 0 : index
      %c0_16 = arith.constant 0 : index
      %17 = vector.load %arg7[%c0_15, %c0_16] : memref<16x128xf32, #tpu.memory_space<vmem>>, vector<16x128xf32>
      tpu.vector_store %arg7[%c0_15, %c0_16], %16 {strides = array<i32>} : memref<16x128xf32, #tpu.memory_space<vmem>>, vector<16x128xf32>,
    } else {
    }
    %c0 = arith.constant 0 : index
    %c0_1 = arith.constant 0 : index
    %3 = vector.load %arg6[%c0, %c0_1] : memref<16x128xf32, #tpu.memory_space<vmem>>, vector<16x128xf32>
    %c0_2 = arith.constant 0 : index
    %c0_3 = arith.constant 0 : index
    %4 = vector.load %arg7[%c0_2, %c0_3] : memref<16x128xf32, #tpu.memory_space<vmem>>, vector<16x128xf32>
    %c0_4 = arith.constant 0 : index
    %c0_5 = arith.constant 0 : index
    %c0_6 = arith.constant 0 : index
    %5 = vector.load %arg2[%c0_4, %c0_5, %c0_6] : memref<1x16x128xf32, #tpu.memory_space<vmem>>, vector<1x16x128xf32>
    %6 = vector.shape_cast %5 : vector<1x16x128xf32> to vector<16x128xf32>
    %7 = arith.addf %3, %6 : vector<16x128xf32>
    %8 = arith.maximumf %4, %6 : vector<16x128xf32>
    %c0_7 = arith.constant 0 : index
    %c0_8 = arith.constant 0 : index
    %9 = vector.load %arg6[%c0_7, %c0_8] : memref<16x128xf32, #tpu.memory_space<vmem>>, vector<16x128xf32>
    tpu.vector_store %arg6[%c0_7, %c0_8], %7 {strides = array<i32>} : memref<16x128xf32, #tpu.memory_space<vmem>>, vector<16x128xf32>,
    %c0_9 = arith.constant 0 : index
    %c0_10 = arith.constant 0 : index
    %10 = vector.load %arg7[%c0_9, %c0_10] : memref<16x128xf32, #tpu.memory_space<vmem>>, vector<16x128xf32>
    tpu.vector_store %arg7[%c0_9, %c0_10], %8 {strides = array<i32>} : memref<16x128xf32, #tpu.memory_space<vmem>>, vector<16x128xf32>,
    %c1_i32 = arith.constant 1 : i32
    %11 = arith.cmpi eq, %arg1, %c1_i32 : i32
    %12 = arith.extui %11 : i1 to i32
    %c0_i32_11 = arith.constant 0 : i32
    %13 = arith.cmpi ne, %12, %c0_i32_11 : i32
    scf.if %13 {
      %c0_12 = arith.constant 0 : index
      %c0_13 = arith.constant 0 : index
      %14 = vector.load %arg6[%c0_12, %c0_13] : memref<16x128xf32, #tpu.memory_space<vmem>>, vector<16x128xf32>
      %cst = arith.constant dense<0.000000e+00> : vector<16xf32>
      %15 = vector.multi_reduction <add>, %14, %cst [1] : vector<16x128xf32> to vector<16xf32>
      %16 = vector.shape_cast %15 : vector<16xf32> to vector<16x1xf32>
      %cst_14 = arith.constant 3.906250e-03 : f32
      %17 = vector.broadcast %cst_14 : f32 to vector<16x1xf32>
      %18 = arith.mulf %16, %17 : vector<16x1xf32>
      %c0_15 = arith.constant 0 : index
      %c0_16 = arith.constant 0 : index
      %19 = vector.load %arg7[%c0_15, %c0_16] : memref<16x128xf32, #tpu.memory_space<vmem>>, vector<16x128xf32>
      %cst_17 = arith.constant dense<0xFF800000> : vector<16xf32>
      %20 = vector.multi_reduction <maximumf>, %19, %cst_17 [1] : vector<16x128xf32> to vector<16xf32>
      %21 = vector.shape_cast %20 : vector<16xf32> to vector<16x1xf32>
      %22 = tpu.transpose %18, [1, 0] : vector<16x1xf32> -> vector<1x16xf32>
      %23 = tpu.transpose %21, [1, 0] : vector<16x1xf32> -> vector<1x16xf32>
      %24 = tpu.concatenate %22, %23 in 0 : vector<1x16xf32>, vector<1x16xf32> -> vector<2x16xf32>
      %c0_18 = arith.constant 0 : index
      %c0_19 = arith.constant 0 : index
      %25 = vector.load %arg3[%c0_18, %c0_19] : memref<4x16xf32, #tpu.memory_space<vmem>>, vector<4x16xf32>
      %c0_20 = arith.constant 0 : index
      %c0_21 = arith.constant 0 : index
      %26 = vector.load %arg4[%c0_20, %c0_21] : memref<16x4xf32, #tpu.memory_space<vmem>>, vector<16x4xf32>
      %cst_22 = arith.constant dense<0.000000e+00> : vector<2x4xf32>
      %27 = tpu.matmul %24, %25, %cst_22 {dimension_numbers = #tpu.dot_dimension_numbers<[1], [1], [0], [0], [0, 0, 1, 0], [], []>} : vector<2x16xf32>, vector<4x16xf32>, vector<2x4xf32> -> vector<2x4xf32>
      %cst_23 = arith.constant 0.000000e+00 : f32
      %28 = vector.broadcast %cst_23 : f32 to vector<2x4xf32>
      %29 = arith.maximumf %27, %28 : vector<2x4xf32>
      %cst_24 = arith.constant dense<0.000000e+00> : vector<2x16xf32>
      %30 = tpu.matmul %29, %26, %cst_24 {dimension_numbers = #tpu.dot_dimension_numbers<[1], [1], [0], [0], [0, 0, 1, 0], [], []>} : vector<2x4xf32>, vector<16x4xf32>, vector<2x16xf32> -> vector<2x16xf32>
      %31 = vector.extract_strided_slice %30 {offsets = [0, 0], sizes = [1, 16], strides = [1, 1]} : vector<2x16xf32> to vector<1x16xf32>
      %32 = vector.extract_strided_slice %30 {offsets = [1, 0], sizes = [1, 16], strides = [1, 1]} : vector<2x16xf32> to vector<1x16xf32>
      %33 = arith.addf %31, %32 : vector<1x16xf32>
      %34 = arith.negf %33 : vector<1x16xf32>
      %35 = math.exp %34 : vector<1x16xf32>
      %cst_25 = arith.constant 1.000000e+00 : f32
      %36 = vector.broadcast %cst_25 : f32 to vector<1x16xf32>
      %37 = arith.addf %36, %35 : vector<1x16xf32>
      %38 = arith.divf %36, %37 : vector<1x16xf32>
      %c0_26 = arith.constant 0 : index
      %c0_27 = arith.constant 0 : index
      %c0_28 = arith.constant 0 : index
      %39 = vector.load %arg5[%c0_26, %c0_27, %c0_28] : memref<1x1x16xf32, #tpu.memory_space<vmem>>, vector<1x1x16xf32>
      %40 = vector.shape_cast %39 : vector<1x1x16xf32> to vector<1x16xf32>
      %41 = vector.shape_cast %38 : vector<1x16xf32> to vector<1x1x16xf32>
      tpu.vector_store %arg5[%c0_26, %c0_27, %c0_28], %41 {strides = array<i32>} : memref<1x1x16xf32, #tpu.memory_space<vmem>>, vector<1x1x16xf32>,
    } else {
    }
    return
  }
  func.func @transform_0(%arg0: i32, %arg1: i32) -> (i32, i32, i32) {
    %c0_i32 = arith.constant 0 : i32
    %c0_i32_0 = arith.constant 0 : i32
    return %arg0, %c0_i32, %arg1 : i32, i32, i32
  }
  func.func @transform_1(%arg0: i32, %arg1: i32) -> (i32, i32) {
    %c0_i32 = arith.constant 0 : i32
    %c0_i32_0 = arith.constant 0 : i32
    %c0_i32_1 = arith.constant 0 : i32
    return %c0_i32, %c0_i32_0 : i32, i32
  }
  func.func @transform_2(%arg0: i32, %arg1: i32) -> (i32, i32) {
    %c0_i32 = arith.constant 0 : i32
    %c0_i32_0 = arith.constant 0 : i32
    %c0_i32_1 = arith.constant 0 : i32
    return %c0_i32, %c0_i32_0 : i32, i32
  }
  func.func @transform_3(%arg0: i32, %arg1: i32) -> (i32, i32, i32) {
    %c0_i32 = arith.constant 0 : i32
    %c0_i32_0 = arith.constant 0 : i32
    %c0_i32_1 = arith.constant 0 : i32
    return %arg0, %c0_i32, %c0_i32_0 : i32, i32, i32
  }
}

</mosaic_0001>

<llo_original>
// kernel: tpu_custom_call.1
$region0: #{tpu_custom_call.1}
  #allocation0 [shape = 'u32[]', space=smem, size = 0x4, offset = 0x4, fixed_abs, tag = 'smem constant byte address 0x4 - core index']
  #allocation1 [shape = 'u32[144,128]{1,0:T(1,128)}', space=vmem, size = 0x12000, scoped, tag = 'internal scratch']
  #allocation2 [shape = 'f32[16,128]{1,0:T(8,128)}', space=vmem, size = 0x2000, scoped, tag = 'scratch operand']
  #allocation3 [shape = 'f32[16,128]{1,0:T(8,128)}', space=vmem, size = 0x2000, scoped, tag = 'scratch operand']
  %s0 = inlined_call_operand.hbm [shape: f32[2,16,256], index: 0, kind: input, shape index: {}]
  %s1 = inlined_call_operand.vmem [shape: f32[4,16], index: 1, kind: input, shape index: {}]
  %s2 = inlined_call_operand.vmem [shape: f32[16,4], index: 2, kind: input, shape index: {}]
  %s3 = inlined_call_operand.hbm [shape: f32[2,1,16], index: 3, kind: output, shape index: {}]
  %s4 = sld [smem:[#allocation0]]
  $region57: #{tpu_custom_call.1} parent=0
    _
  %s6 = ssub.s32 1, %s4
  %s7 = scalar_select 0, %s6, %s4
  $region1: #{tpu_custom_call.1} parent=0
    #allocation4 [shape = 'u8[16384]{0}', space=vmem, size = 0x4000, scoped, tag = 'input window, operand 0']
    #allocation5 [shape = 's32[2]{0}', space=sflag, size = 0x8, scoped, tag = 'scoped memory for tpu_custom_call.1']
    #allocation6 [shape = 's32[2]{0}', space=sflag, size = 0x8, scoped, tag = 'scoped memory for tpu_custom_call.1']
    #allocation7 [shape = 'u8[1024]{0}', space=vmem, size = 0x400, scoped, tag = 'output window, operand 0']
    %8 = vsyncpa [#allocation5], 0
    %s9 = scalar_lea.sflag [#allocation5], 1
    %10 = vsyncpa %s9, 0
    %11 = vsyncpa [#allocation6], 0
    %s12 = scalar_lea.sflag [#allocation6], 1
    %13 = vsyncpa %s12, 0
    loop: start=0, step=1, limit=6
    $region2: #{tpu_custom_call.1} parent=1 // loop_pre_header
      _
    $region3: #{tpu_custom_call.1} parent=1 // loop_header
      %s15 = sphi 0, %s19
      %p16 = scmp.ge.s32.totalorder %s15, 6
      %s22 = sphi 0, %s34
      %s23 = sphi 0, %s30
      %s24 = sphi 0, %s22
      %s25 = sphi 0, %s23
      %s26 = sphi 0, %s24
      %s27 = sphi 0, %s25
      %s39 = sphi 0, %s41
      %s42 = sphi 0, %s39
      %s43 = sphi 0, %s42
      %s59 = sphi 0, %s43
      %s63 = sphi 0, %s63
      %s65 = sphi 0, %s63
      %s66 = sphi 0, %s65
      %s80 = sphi 0, %s66
      %s84 = sphi 0, %s84
      %s86 = sphi 0, %s84
      %s87 = sphi 0, %s86
      %s101 = sphi 0, %s87
      %s107 = sphi 0, %s109
      %s110 = sphi 0, %s107
      %s111 = sphi 0, %s110
      %s127 = sphi 0, %s111
    $region4: #{tpu_custom_call.1} parent=1 // loop_header_branch
      %18 = sbr.rel (%p16) target = $region8
    $region5: #{tpu_custom_call.1} parent=1 // loop_body
      %s20 = ssub.s32 %s15, 1
      %s21 = ssub.s32 %s15, 2
      %s28 = sadd.s32 1, %s23
      %p29 = scmp.ge.s32.totalorder %s28, 2
      %s30 = scalar_select %p29, 0, %s28
      %s31 = sadd.s32 1, %s22
      %s32 = scalar_select %p29, %s31, %s22
      %p33 = scmp.ge.s32.totalorder %s32, 2
      %s34 = scalar_select %p33, 0, %s32
      %s35 = ssub.s32 %s22, %s34
      %s36 = ssub.s32 %s23, %s30
      %s37 = sor.u32 %s35, %s36
      %p38 = scmp.eq.s32.totalorder %s37, 0
      %s40 = sadd.s32 %s39, 1
      %s41 = scalar_select %p38, %s39, %s40
      %p44 = pneg %p38
      %p45 = scmp.eq.s32.totalorder %s15, 3
      %p46 = por %p44, %p45
      %p47 = scmp.ne.s32.totalorder %s39, %s42
      %p48 = scmp.eq.s32.totalorder %s15, 0
      %p49 = por %p47, %p48
      %p50 = scmp.ne.s32.totalorder %s39, %s42
      %p51 = scmp.eq.s32.totalorder %s20, 3
      %p52 = por %p50, %p51
      %p53 = scmp.ne.s32.totalorder %s42, %s43
      %p54 = scmp.eq.s32.totalorder %s20, 0
      %p55 = por %p53, %p54
      %p56 = scmp.ne.s32.totalorder %s42, %s43
      %p57 = scmp.eq.s32.totalorder %s21, 3
      %p58 = por %p56, %p57
      %p60 = scmp.ne.s32.totalorder %s43, %s59
      %p61 = scmp.eq.s32.totalorder %s21, 0
      %p62 = por %p60, %p61
      %s64 = sadd.s32 %s63, 1
      %p67 = scmp.eq.s32.totalorder %s15, 3
      %p68 = scmp.ne.s32.totalorder %s63, %s65
      %p69 = scmp.eq.s32.totalorder %s15, 0
      %p70 = por %p68, %p69
      %p71 = scmp.ne.s32.totalorder %s63, %s65
      %p72 = scmp.eq.s32.totalorder %s20, 3
      %p73 = por %p71, %p72
      %p74 = scmp.ne.s32.totalorder %s65, %s66
      %p75 = scmp.eq.s32.totalorder %s20, 0
      %p76 = por %p74, %p75
      %p77 = scmp.ne.s32.totalorder %s65, %s66
      %p78 = scmp.eq.s32.totalorder %s21, 3
      %p79 = por %p77, %p78
      %p81 = scmp.ne.s32.totalorder %s66, %s80
      %p82 = scmp.eq.s32.totalorder %s21, 0
      %p83 = por %p81, %p82
      %s85 = sadd.s32 %s84, 1
      %p88 = scmp.eq.s32.totalorder %s15, 3
      %p89 = scmp.ne.s32.totalorder %s84, %s86
      %p90 = scmp.eq.s32.totalorder %s15, 0
      %p91 = por %p89, %p90
      %p92 = scmp.ne.s32.totalorder %s84, %s86
      %p93 = scmp.eq.s32.totalorder %s20, 3
      %p94 = por %p92, %p93
      %p95 = scmp.ne.s32.totalorder %s86, %s87
      %p96 = scmp.eq.s32.totalorder %s20, 0
      %p97 = por %p95, %p96
      %p98 = scmp.ne.s32.totalorder %s86, %s87
      %p99 = scmp.eq.s32.totalorder %s21, 3
      %p100 = por %p98, %p99
      %p102 = scmp.ne.s32.totalorder %s87, %s101
      %p103 = scmp.eq.s32.totalorder %s21, 0
      %p104 = por %p102, %p103
      %s105 = ssub.s32 %s22, %s34
      %p106 = scmp.eq.s32.totalorder %s105, 0
      %s108 = sadd.s32 %s107, 1
      %s109 = scalar_select %p106, %s107, %s108
      %p112 = pneg %p106
      %p113 = scmp.eq.s32.totalorder %s15, 3
      %p114 = por %p112, %p113
      %p115 = scmp.ne.s32.totalorder %s107, %s110
      %p116 = scmp.eq.s32.totalorder %s15, 0
      %p117 = por %p115, %p116
      %p118 = scmp.ne.s32.totalorder %s107, %s110
      %p119 = scmp.eq.s32.totalorder %s20, 3
      %p120 = por %p118, %p119
      %p121 = scmp.ne.s32.totalorder %s110, %s111
      %p122 = scmp.eq.s32.totalorder %s20, 0
      %p123 = por %p121, %p122
      %p124 = scmp.ne.s32.totalorder %s110, %s111
      %p125 = scmp.eq.s32.totalorder %s21, 3
      %p126 = por %p124, %p125
      %p128 = scmp.ne.s32.totalorder %s111, %s127
      %p129 = scmp.eq.s32.totalorder %s21, 0
      %p130 = por %p128, %p129
      %p131 = scmp.le.s32.totalorder 1, %s15
      %p132 = scmp.lt.s32.totalorder %s15, 5
      %p133 = pnand %p131, %p132
      %p134 = pneg %p133
      // Predicated region
      $region9: #{tpu_custom_call.1} parent=5 // pred_check
        _
      $region10: #{tpu_custom_call.1} parent=5 // pred_check_branch
        %136 = sbr.rel (%p133) target = $region12
      $region11: #{tpu_custom_call.1} parent=5 // pred_region
        %s137 = ssub.s32 %s15, 1
        // Predicated region
        $region13: #{tpu_custom_call.1} parent=11 // pred_check
          %p138 = pneg %p76
        $region14: #{tpu_custom_call.1} parent=11 // pred_check_branch
          %140 = sbr.rel (%p138) target = $region16
        $region15: #{tpu_custom_call.1} parent=11 // pred_region
          _
        $region16: #{tpu_custom_call.1} parent=11 // pred_fallthru
          _
        // Predicated region
        $region17: #{tpu_custom_call.1} parent=11 // pred_check
          %p141 = pneg %p97
        $region18: #{tpu_custom_call.1} parent=11 // pred_check_branch
          %143 = sbr.rel (%p141) target = $region20
        $region19: #{tpu_custom_call.1} parent=11 // pred_region
          _
        $region20: #{tpu_custom_call.1} parent=11 // pred_fallthru
          _
      $region12: #{tpu_custom_call.1} parent=5 // pred_fallthru
        _
      %p144 = scmp.lt.s32.totalorder %s15, 4
      // Predicated region
      $region21: #{tpu_custom_call.1} parent=5 // pred_check
        %p145 = pneg %p144
      $region22: #{tpu_custom_call.1} parent=5 // pred_check_branch
        %147 = sbr.rel (%p145) target = $region24
      $region23: #{tpu_custom_call.1} parent=5 // pred_region
        // Predicated region
        $region25: #{tpu_custom_call.1} parent=23 // pred_check
          %p148 = pneg %p49
        $region26: #{tpu_custom_call.1} parent=23 // pred_check_branch
          %150 = sbr.rel (%p148) target = $region28
        $region27: #{tpu_custom_call.1} parent=23 // pred_region
          %s151 = sand.u32 %s39, 1
          %s152 = scalar_lea.sflag [#allocation5], %s151
          %s153 = sand.u32 %s39, 1
          %s154 = smul.addr %s153, 16
          %s155 = scalar_lea.vmem [#allocation4], %s154
          %s157 = ssub.s32 256, 256
          %158 = vsyncadd %s152, %s157
          %s159 = smul.addr %s22, 4
          %s160 = sadd.s32 %s23, %s159
          %s161 = smul.addr %s160, 128
          %s162 = scalar_lea.hbm %s0, %s161
          %s163 = sshll.u32 %s155, 4
          %s164 = int_to_ptr.vmem [resolvable:$true] %s163
          %169 = dma.hbm_to_vmem [thread:$0]  %s162, 256, %s164, %s152, 256, 128, 8
        $region28: #{tpu_custom_call.1} parent=23 // pred_fallthru
          _
      $region24: #{tpu_custom_call.1} parent=5 // pred_fallthru
        _
      %p170 = scmp.le.s32.totalorder 1, %s15
      %p171 = scmp.lt.s32.totalorder %s15, 5
      %p172 = pnand %p170, %p171
      %p173 = pneg %p172
      // Predicated region
      $region29: #{tpu_custom_call.1} parent=5 // pred_check
        _
      $region30: #{tpu_custom_call.1} parent=5 // pred_check_branch
        %175 = sbr.rel (%p172) target = $region32
      $region31: #{tpu_custom_call.1} parent=5 // pred_region
        %s176 = ssub.s32 %s15, 1
        %s177 = sand.u32 %s42, 1
        %s178 = scalar_lea.sflag [#allocation5], %s177
        %s179 = sand.u32 %s42, 1
        %s180 = smul.addr %s179, 16
        %s181 = scalar_lea.vmem [#allocation4], %s180
        // Predicated region
        $region33: #{tpu_custom_call.1} parent=31 // pred_check
          %p182 = pneg %p55
        $region34: #{tpu_custom_call.1} parent=31 // pred_check_branch
          %184 = sbr.rel (%p182) target = $region36
        $region35: #{tpu_custom_call.1} parent=31 // pred_region
          %185 = dma.done %s178, 256
        $region36: #{tpu_custom_call.1} parent=31 // pred_fallthru
          _
        %s186 = sand.u32 %s42, 1
        %s187 = scalar_lea.sflag [#allocation5], %s186
        %s188 = sand.u32 %s42, 1
        %s189 = smul.addr %s188, 16
        %s190 = scalar_lea.vmem [#allocation4], %s189
        %p191 = pneg %p55
        %p192 = pneg %p52
        %p193 = pneg %p76
        %p194 = pneg %p73
        %p195 = pneg %p97
        %p196 = pneg %p94
        %p197 = pneg %p123
        %p198 = pneg %p120
        %s199 = sand.u32 %s110, 1
        %s200 = scalar_lea.sflag [#allocation6], %s199
        %s201 = sand.u32 %s110, 1
        %s202 = scalar_lea.vmem [#allocation7], %s201
        %p203 = scmp.eq.s32.totalorder %s25, 0
        // Predicated region
        $region37: #{tpu_custom_call.1} parent=31 // pred_check
          %p204 = pneg %p203
        $region38: #{tpu_custom_call.1} parent=31 // pred_check_branch
          %206 = sbr.rel (%p204) target = $region40
        $region39: #{tpu_custom_call.1} parent=31 // pred_region
          %207 = vst [vmem:[#allocation2] sm:$0xff] 0.0
          %208 = vst [vmem:[#allocation2 + $0x8] sm:$0xff] 0.0
          %209 = vst [vmem:[#allocation3] sm:$0xff] -inf
          %210 = vst [vmem:[#allocation3 + $0x8] sm:$0xff] -inf
        $region40: #{tpu_custom_call.1} parent=31 // pred_fallthru
          _
        %v211 = vld [vmem:[#allocation2] sm:$0xff]
        %v212 = vld [vmem:[#allocation2 + $0x8] sm:$0xff]
        %v213 = vld [vmem:[#allocation3] sm:$0xff]
        %v214 = vld [vmem:[#allocation3 + $0x8] sm:$0xff]
        %v215 = vld [vmem:[%s181] sm:$0xff]
        %v216 = vld [vmem:[%s181 + $0x8] sm:$0xff]
        %v217 = vadd.f32 %v211, %v215
        %v218 = vadd.f32 %v212, %v216
        %v219 = vmax.f32 %v213, %v215
        %v220 = vmax.f32 %v214, %v216
        %221 = vst [vmem:[#allocation2] sm:$0xff] %v217
        %222 = vst [vmem:[#allocation2 + $0x8] sm:$0xff] %v218
        %223 = vst [vmem:[#allocation3] sm:$0xff] %v219
        %224 = vst [vmem:[#allocation3 + $0x8] sm:$0xff] %v220
        %p225 = scmp.eq.s32.totalorder %s25, 1
        // Predicated region
        $region41: #{tpu_custom_call.1} parent=31 // pred_check
          %p226 = pneg %p225
        $region42: #{tpu_custom_call.1} parent=31 // pred_check_branch
          %228 = sbr.rel (%p226) target = $region44
        $region43: #{tpu_custom_call.1} parent=31 // pred_region
          %v229 = vld [vmem:[#allocation2] sm:$0xff]
          %v230 = vld [vmem:[#allocation2 + $0x8] sm:$0xff]
          %231 = vadd.xlane.f32.xlu0 %v229
          %v232 = vpop.xlane.xlu0 %231
          %233 = vadd.xlane.f32.xlu0 %v230
          %v234 = vpop.xlane.xlu0 %233
          %v235 = vmul.f32 %v232, 0.00390625
          %v236 = vmul.f32 %v234, 0.00390625
          %v237 = vld [vmem:[#allocation3] sm:$0xff]
          %v238 = vld [vmem:[#allocation3 + $0x8] sm:$0xff]
          %239 = vmax.xlane.f32.xlu0 %v237
          %v240 = vpop.xlane.xlu0 %239
          %241 = vmax.xlane.f32.xlu0 %v238
          %v242 = vpop.xlane.xlu0 %241
          %243 = vxpose.xlu0.b32.start [1/16] %v235, 128
          %244 = vxpose.xlu0.b32.cont [2/16] %v236, 128
          %245 = vxpose.xlu0.b32.cont [3/16] 0.0, 128
          %246 = vxpose.xlu0.b32.cont [4/16] 0.0, 128
          %247 = vxpose.xlu0.b32.cont [5/16] 0.0, 128
          %248 = vxpose.xlu0.b32.cont [6/16] 0.0, 128
          %249 = vxpose.xlu0.b32.cont [7/16] 0.0, 128
          %250 = vxpose.xlu0.b32.cont [8/16] 0.0, 128
          %251 = vxpose.xlu0.b32.cont [9/16] 0.0, 128
          %252 = vxpose.xlu0.b32.cont [10/16] 0.0, 128
          %253 = vxpose.xlu0.b32.cont [11/16] 0.0, 128
          %254 = vxpose.xlu0.b32.cont [12/16] 0.0, 128
          %255 = vxpose.xlu0.b32.cont [13/16] 0.0, 128
          %256 = vxpose.xlu0.b32.cont [14/16] 0.0, 128
          %257 = vxpose.xlu0.b32.cont [15/16] 0.0, 128
          %258 = vxpose.xlu0.b32.end [16/16] 0.0, 128
          %v259 = vpop.trf.xlu0
          %v260 = vpop.trf.xlu0
          %v261 = vpop.trf.xlu0
          %v262 = vpop.trf.xlu0
          %v263 = vpop.trf.xlu0
          %v264 = vpop.trf.xlu0
          %v265 = vpop.trf.xlu0
          %v266 = vpop.trf.xlu0
          %v267 = vpop.trf.xlu0
          %v268 = vpop.trf.xlu0
          %v269 = vpop.trf.xlu0
          %v270 = vpop.trf.xlu0
          %v271 = vpop.trf.xlu0
          %v272 = vpop.trf.xlu0
          %v273 = vpop.trf.xlu0
          %v274 = vpop.trf.xlu0
          %275 = vxpose.xlu0.b32.start [1/16] %v240, 128
          %276 = vxpose.xlu0.b32.cont [2/16] %v242, 128
          %277 = vxpose.xlu0.b32.cont [3/16] 0.0, 128
          %278 = vxpose.xlu0.b32.cont [4/16] 0.0, 128
          %279 = vxpose.xlu0.b32.cont [5/16] 0.0, 128
          %280 = vxpose.xlu0.b32.cont [6/16] 0.0, 128
          %281 = vxpose.xlu0.b32.cont [7/16] 0.0, 128
          %282 = vxpose.xlu0.b32.cont [8/16] 0.0, 128
          %283 = vxpose.xlu0.b32.cont [9/16] 0.0, 128
          %284 = vxpose.xlu0.b32.cont [10/16] 0.0, 128
          %285 = vxpose.xlu0.b32.cont [11/16] 0.0, 128
          %286 = vxpose.xlu0.b32.cont [12/16] 0.0, 128
          %287 = vxpose.xlu0.b32.cont [13/16] 0.0, 128
          %288 = vxpose.xlu0.b32.cont [14/16] 0.0, 128
          %289 = vxpose.xlu0.b32.cont [15/16] 0.0, 128
          %290 = vxpose.xlu0.b32.end [16/16] 0.0, 128
          %v291 = vpop.trf.xlu0
          %v292 = vpop.trf.xlu0
          %v293 = vpop.trf.xlu0
          %v294 = vpop.trf.xlu0
          %v295 = vpop.trf.xlu0
          %v296 = vpop.trf.xlu0
          %v297 = vpop.trf.xlu0
          %v298 = vpop.trf.xlu0
          %v299 = vpop.trf.xlu0
          %v300 = vpop.trf.xlu0
          %v301 = vpop.trf.xlu0
          %v302 = vpop.trf.xlu0
          %v303 = vpop.trf.xlu0
          %v304 = vpop.trf.xlu0
          %v305 = vpop.trf.xlu0
          %v306 = vpop.trf.xlu0
          %v308 = vrot.slane %v291, 7
          %vm310 = vcmask 1040384
          %v311 = vsel %vm310, %v259, %v308
          %v312 = vld [vmem:[%s1] sm:$0xf]
          %v313 = vld [vmem:[%s2] sm:$0xff]
          %v314 = vld [vmem:[%s2 + $0x8] sm:$0xff]
          %vm315 = vcmask 130048
          %v317 = vsel %vm315, %v311, 0
          %v320 = vsel %vm315, %v312, 0
          %322 = vmatprep.subr.mxu0 0.0
          %323 = vmatpush1.xpose.msra.mxu0 %v320
          %324 = vmatprep.subr.mxu0 0.0
          %325 = vmatpush1.xpose.msra.mxu0 0.0
          %326 = vmatprep.subr.mxu0 0.0
          %327 = vmatpush1.xpose.msra.mxu0 0.0
          %328 = vmatprep.subr.mxu0 0.0
          %329 = vmatpush1.xpose.msra.mxu0 0.0
          %330 = vmatprep.subr.mxu0 0.0
          %331 = vmatpush1.xpose.msra.mxu0 0.0
          %332 = vmatprep.subr.mxu0 0.0
          %333 = vmatpush1.xpose.msra.mxu0 0.0
          %334 = vmatprep.subr.mxu0 0.0
          %335 = vmatpush1.xpose.msra.mxu0 0.0
          %336 = vmatprep.subr.mxu0 0.0
          %337 = vmatpush1.xpose.msra.mxu0 0.0
          %338 = vmatprep.subr.mxu0 0.0
          %339 = vmatpush1.xpose.msra.mxu0 0.0
          %340 = vmatprep.subr.mxu0 0.0
          %341 = vmatpush1.xpose.msra.mxu0 0.0
          %342 = vmatprep.subr.mxu0 0.0
          %343 = vmatpush1.xpose.msra.mxu0 0.0
          %344 = vmatprep.subr.mxu0 0.0
          %345 = vmatpush1.xpose.msra.mxu0 0.0
          %346 = vmatprep.subr.mxu0 0.0
          %347 = vmatpush1.xpose.msra.mxu0 0.0
          %348 = vmatprep.subr.mxu0 0.0
          %349 = vmatpush1.xpose.msra.mxu0 0.0
          %350 = vmatprep.subr.mxu0 0.0
          %351 = vmatpush1.xpose.msra.mxu0 0.0
          %352 = vmatprep.subr.mxu0 0.0
          %353 = vmatpush1.xpose.msra.mxu0 0.0
          %354 = vmatprep.subr.mxu0 0.0
          %355 = vmatpush1.xpose.msra.mxu0 0.0
          %356 = vmatprep.subr.mxu0 0.0
          %357 = vmatpush1.xpose.msra.mxu0 0.0
          %358 = vmatprep.subr.mxu0 0.0
          %359 = vmatpush1.xpose.msra.mxu0 0.0
          %360 = vmatprep.subr.mxu0 0.0
          %361 = vmatpush1.xpose.msra.mxu0 0.0
          %362 = vmatprep.subr.mxu0 0.0
          %363 = vmatpush1.xpose.msra.mxu0 0.0
          %364 = vmatprep.subr.mxu0 0.0
          %365 = vmatpush1.xpose.msra.mxu0 0.0
          %366 = vmatprep.subr.mxu0 0.0
          %367 = vmatpush1.xpose.msra.mxu0 0.0
          %368 = vmatprep.subr.mxu0 0.0
          %369 = vmatpush1.xpose.msra.mxu0 0.0
          %370 = vmatprep.subr.mxu0 0.0
          %371 = vmatpush1.xpose.msra.mxu0 0.0
          %372 = vmatprep.subr.mxu0 0.0
          %373 = vmatpush1.xpose.msra.mxu0 0.0
          %374 = vmatprep.subr.mxu0 0.0
          %375 = vmatpush1.xpose.msra.mxu0 0.0
          %376 = vmatprep.subr.mxu0 0.0
          %377 = vmatpush1.xpose.msra.mxu0 0.0
          %378 = vmatprep.subr.mxu0 0.0
          %379 = vmatpush1.xpose.msra.mxu0 0.0
          %380 = vmatprep.subr.mxu0 0.0
          %381 = vmatpush1.xpose.msra.mxu0 0.0
          %382 = vmatprep.subr.mxu0 0.0
          %383 = vmatpush1.xpose.msra.mxu0 0.0
          %384 = vmatprep.subr.mxu0 0.0
          %385 = vmatpush1.xpose.msra.mxu0 0.0
          %386 = vmatprep.mubr.f32.mxu0 0.0
          %387 = vmatmul.mubr.f32.gmra.mrb[0].mxu0 %v317
          %v388 = vpop.f32.mrb[0].mxu0
          %v389 = vadd.f32 0.0, %v388
          %v390 = vpop.f32.mrb[0].mxu0
          %391 = vdwg.mxu0
          %v392 = vmax.f32 %v389, 0.0
          %vm393 = vcmask 31744
          %v395 = vsel %vm393, %v392, 0
          %v398 = vsel %vm393, %v313, 0
          %v401 = vsel %vm393, %v314, 0
          %403 = vmatprep.subr.mxu0 0.0
          %404 = vmatpush1.xpose.msra.mxu0 %v398
          %405 = vmatprep.subr.mxu0 0.0
          %406 = vmatpush1.xpose.msra.mxu0 %v401
          %407 = vmatprep.subr.mxu0 0.0
          %408 = vmatpush1.xpose.msra.mxu0 0.0
          %409 = vmatprep.subr.mxu0 0.0
          %410 = vmatpush1.xpose.msra.mxu0 0.0
          %411 = vmatprep.subr.mxu0 0.0
          %412 = vmatpush1.xpose.msra.mxu0 0.0
          %413 = vmatprep.subr.mxu0 0.0
          %414 = vmatpush1.xpose.msra.mxu0 0.0
          %415 = vmatprep.subr.mxu0 0.0
          %416 = vmatpush1.xpose.msra.mxu0 0.0
          %417 = vmatprep.subr.mxu0 0.0
          %418 = vmatpush1.xpose.msra.mxu0 0.0
          %419 = vmatprep.subr.mxu0 0.0
          %420 = vmatpush1.xpose.msra.mxu0 0.0
          %421 = vmatprep.subr.mxu0 0.0
          %422 = vmatpush1.xpose.msra.mxu0 0.0
          %423 = vmatprep.subr.mxu0 0.0
          %424 = vmatpush1.xpose.msra.mxu0 0.0
          %425 = vmatprep.subr.mxu0 0.0
          %426 = vmatpush1.xpose.msra.mxu0 0.0
          %427 = vmatprep.subr.mxu0 0.0
          %428 = vmatpush1.xpose.msra.mxu0 0.0
          %429 = vmatprep.subr.mxu0 0.0
          %430 = vmatpush1.xpose.msra.mxu0 0.0
          %431 = vmatprep.subr.mxu0 0.0
          %432 = vmatpush1.xpose.msra.mxu0 0.0
          %433 = vmatprep.subr.mxu0 0.0
          %434 = vmatpush1.xpose.msra.mxu0 0.0
          %435 = vmatprep.subr.mxu0 0.0
          %436 = vmatpush1.xpose.msra.mxu0 0.0
          %437 = vmatprep.subr.mxu0 0.0
          %438 = vmatpush1.xpose.msra.mxu0 0.0
          %439 = vmatprep.subr.mxu0 0.0
          %440 = vmatpush1.xpose.msra.mxu0 0.0
          %441 = vmatprep.subr.mxu0 0.0
          %442 = vmatpush1.xpose.msra.mxu0 0.0
          %443 = vmatprep.subr.mxu0 0.0
          %444 = vmatpush1.xpose.msra.mxu0 0.0
          %445 = vmatprep.subr.mxu0 0.0
          %446 = vmatpush1.xpose.msra.mxu0 0.0
          %447 = vmatprep.subr.mxu0 0.0
          %448 = vmatpush1.xpose.msra.mxu0 0.0
          %449 = vmatprep.subr.mxu0 0.0
          %450 = vmatpush1.xpose.msra.mxu0 0.0
          %451 = vmatprep.subr.mxu0 0.0
          %452 = vmatpush1.xpose.msra.mxu0 0.0
          %453 = vmatprep.subr.mxu0 0.0
          %454 = vmatpush1.xpose.msra.mxu0 0.0
          %455 = vmatprep.subr.mxu0 0.0
          %456 = vmatpush1.xpose.msra.mxu0 0.0
          %457 = vmatprep.subr.mxu0 0.0
          %458 = vmatpush1.xpose.msra.mxu0 0.0
          %459 = vmatprep.subr.mxu0 0.0
          %460 = vmatpush1.xpose.msra.mxu0 0.0
          %461 = vmatprep.subr.mxu0 0.0
          %462 = vmatpush1.xpose.msra.mxu0 0.0
          %463 = vmatprep.subr.mxu0 0.0
          %464 = vmatpush1.xpose.msra.mxu0 0.0
          %465 = vmatprep.subr.mxu0 0.0
          %466 = vmatpush1.xpose.msra.mxu0 0.0
          %467 = vmatprep.mubr.f32.mxu0 0.0
          %468 = vmatmul.mubr.f32.gmra.mrb[0].mxu0 %v395
          %v469 = vpop.f32.mrb[0].mxu0
          %v470 = vadd.f32 0.0, %v469
          %v471 = vpop.f32.mrb[0].mxu0
          %472 = vdwg.mxu0
          %v474 = vrot.slane %v470, 1
          %v476 = vadd.f32 %v470, %v474
          %v477 = vxor.u32 %v476, 2147483648
          %v478 = vmul.f32 %v477, 1.442695
          %v479 = vpow.pop %v478
          %v480 = vadd.f32 %v479, 1.0
          %v481 = vrcp.pop %v480
          %v482 = vmul.f32 1.0, %v481
          %vm483 = vcmask 122880
          %484 = vst.msk [vmem:[%s202] sm:$0x1] %vm483, %v482
        $region44: #{tpu_custom_call.1} parent=31 // pred_fallthru
          _
        %s485 = sand.u32 %s110, 1
        %s486 = scalar_lea.sflag [#allocation6], %s485
        %s487 = sand.u32 %s110, 1
        %s488 = scalar_lea.vmem [#allocation7], %s487
        // Predicated region
        $region45: #{tpu_custom_call.1} parent=31 // pred_check
          %p489 = pneg %p120
        $region46: #{tpu_custom_call.1} parent=31 // pred_check_branch
          %491 = sbr.rel (%p489) target = $region48
        $region47: #{tpu_custom_call.1} parent=31 // pred_region
          %s493 = ssub.s32 16, 16
          %494 = vsyncadd %s486, %s493
          %s495 = smul.addr %s24, 16
          %s496 = scalar_lea.hbm %s3, %s495
          %s498 = sshll.u32 %s488, 4
          %s499 = int_to_ptr.vmem [resolvable:$true] %s498
          %501 = dma.vmem_to_hbm [thread:$0]  %s499, 16, %s496, %s486
        $region48: #{tpu_custom_call.1} parent=31 // pred_fallthru
          _
      $region32: #{tpu_custom_call.1} parent=5 // pred_fallthru
        _
      %p502 = scmp.le.s32.totalorder 2, %s15
      // Predicated region
      $region49: #{tpu_custom_call.1} parent=5 // pred_check
        %p503 = pneg %p502
      $region50: #{tpu_custom_call.1} parent=5 // pred_check_branch
        %505 = sbr.rel (%p503) target = $region52
      $region51: #{tpu_custom_call.1} parent=5 // pred_region
        %s506 = ssub.s32 %s15, 2
        // Predicated region
        $region53: #{tpu_custom_call.1} parent=51 // pred_check
          %p507 = pneg %p126
        $region54: #{tpu_custom_call.1} parent=51 // pred_check_branch
          %509 = sbr.rel (%p507) target = $region56
        $region55: #{tpu_custom_call.1} parent=51 // pred_region
          %s510 = sand.u32 %s111, 1
          %s511 = scalar_lea.sflag [#allocation6], %s510
          %s512 = sand.u32 %s111, 1
          %s513 = scalar_lea.vmem [#allocation7], %s512
          %514 = dma.done %s511, 16
        $region56: #{tpu_custom_call.1} parent=51 // pred_fallthru
          _
      $region52: #{tpu_custom_call.1} parent=5 // pred_fallthru
        _
    $region6: #{tpu_custom_call.1} parent=1 // loop_footer
      %s19 = sadd.s32 1, %s15
    $region7: #{tpu_custom_call.1} parent=1 // loop_footer_branch
      %14 = sbr.rel target = $region3
    $region8: #{tpu_custom_call.1} parent=1 // loop_exit
      _
    %515 = vsyncpa [#allocation5], 1
    %s516 = scalar_lea.sflag [#allocation5], 1
    %517 = vsyncpa %s516, 1
    %518 = vsyncpa [#allocation6], 1
    %s519 = scalar_lea.sflag [#allocation6], 1
    %520 = vsyncpa %s519, 1

</llo_original>
